<compile_context>
chip_gen: v7x
topology: tpu7x:2x2x1
jax: 0.10.0
libtpu: 0.0.40
codegen_flags: <defaults>
</compile_context>

<pallas_src>
import jax
import jax.numpy as jnp
from jax.experimental import pallas as pl
from jax.experimental.pallas import tpu as pltpu


def _round_up(x, m):
    return ((x + m - 1) // m) * m


def _num_tensorcores():
    """Best-effort TensorCores-per-chip count (v5e/v6e: 1, v7x: 2)."""
    try:
        dev = jax.devices()[0]
    except Exception:
        return 1
    nc = getattr(dev, "num_cores", None)
    if isinstance(nc, int) and nc >= 1:
        return nc
    kind = str(getattr(dev, "device_kind", "")).lower()
    return 2 if ("v7" in kind or "7x" in kind) else 1


def policy_kernel(s_ref, w1_ref, b1_ref, w2_ref, b2_ref, w3_ref, b3_ref,
                  rng_ref, out_ref):
    mm_dtype = w1_ref.dtype        # bf16 (or f32) operands for every MXU pass

    # In-kernel cast of the state tile (VPU op, hidden under the input DMA).
    s = s_ref[...].astype(mm_dtype)

    # hidden layer 1: relu(s @ W1 + b1)   (MXU matmul, f32 accumulate)
    h = jnp.dot(s, w1_ref[...], preferred_element_type=jnp.float32)
    h = jnp.maximum(h + b1_ref[...], 0.0)

    # hidden layer 2: relu(h @ W2 + b2) — cast back to the matmul dtype so
    # the MXU keeps seeing bf16 operands instead of promoting W2 to f32.
    h = jnp.dot(h.astype(mm_dtype), w2_ref[...],
                preferred_element_type=jnp.float32)
    h = jnp.maximum(h + b2_ref[...], 0.0)

    # output layer: a = h @ W3 + b3
    a = jnp.dot(h.astype(mm_dtype), w3_ref[...],
                preferred_element_type=jnp.float32)
    a = a + b3_ref[...]

    # final_activation: tanh(a) * act_rng   (EUP tanh, SMEM scalar scale)
    out_ref[...] = (jnp.tanh(a) * rng_ref[0, 0]).astype(out_ref.dtype)


def policy_forward(s, params, act_rng, *, batch_tile=8192,
                   compute_dtype=jnp.bfloat16):
    """Pallas implementation of Policy.forward(s, t) (t is unused)."""
    w1, b1, w2, b2, w3, b3 = params
    B, n = s.shape
    nh = w1.shape[1]
    m = w3.shape[1]

    # ---- per-chip tile: 1 grid step on v5e/v6e, >=2 on v7x, large cap ------
    n_tc = max(_num_tensorcores(), 1)
    tile = _round_up(max(pl.cdiv(B, n_tc), 1), 8)
    tile = min(tile, _round_up(batch_tile, 8))
    grid = (pl.cdiv(B, tile),)     # partial final block handled by Pallas

    # ---- dtype plumbing: bf16 matmul weights, f32 biases (tiny arrays) -----
    w1c, w2c, w3c = (w.astype(compute_dtype) for w in (w1, w2, w3))
    b1f, b2f, b3f = (b.astype(jnp.float32) for b in (b1, b2, b3))
    rng_arr = jnp.asarray(act_rng, dtype=jnp.float32).reshape(1, 1)

    # Constant index maps: weight/bias blocks stay resident in VMEM across
    # batch grid steps (one DMA for the whole call, no per-step re-fetch).
    full = lambda shape: pl.BlockSpec(shape, lambda i: (0, 0))

    out = pl.pallas_call(
        policy_kernel,
        out_shape=jax.ShapeDtypeStruct((B, m), jnp.float32),
        grid_spec=pltpu.PrefetchScalarGridSpec(
            num_scalar_prefetch=0,
            grid=grid,
            in_specs=[
                pl.BlockSpec((tile, n), lambda i: (i, 0)),   # s tile (f32 in)
                full((n, nh)),    # W1
                full((1, nh)),    # b1
                full((nh, nh)),   # W2
                full((1, nh)),    # b2
                full((nh, m)),    # W3
                full((1, m)),     # b3
                pl.BlockSpec(memory_space=pltpu.MemorySpace.SMEM),  # act_rng
            ],
            out_specs=pl.BlockSpec((tile, m), lambda i: (i, 0)),
        ),
        compiler_params=pltpu.CompilerParams(
            dimension_semantics=("parallel",)),
    )(s, w1c, b1f, w2c, b2f, w3c, b3f, rng_arr)

    return out


def init_policy_params(key, n, m, n_hidden, w=0.1):
    """Deterministic init mirroring reset_parameters(w=0.1): U(-w, w)."""
    k1, k2, k3, k4, k5, k6 = jax.random.split(key, 6)
    uni = lambda k, shape: jax.random.uniform(
        k, shape, dtype=jnp.float32, minval=-w, maxval=w)
    w1 = uni(k1, (n, n_hidden))
    b1 = uni(k2, (1, n_hidden))
    w2 = uni(k3, (n_hidden, n_hidden))
    b2 = uni(k4, (1, n_hidden))
    w3 = uni(k5, (n_hidden, m))
    b3 = uni(k6, (1, m))
    return (w1, b1, w2, b2, w3, b3)


def policy_ref(s, params, act_rng):
    """Pure-JAX reference for correctness checking."""
    w1, b1, w2, b2, w3, b3 = params
    h = jnp.maximum(s @ w1 + b1, 0.0)
    h = jnp.maximum(h @ w2 + b2, 0.0)
    a = h @ w3 + b3
    return jnp.tanh(a) * act_rng


if __name__ == "__main__":
    # Shapes consistent with the module: env.n=16 state dims, env.m=4 action
    # dims, 2 hidden layers of 32 units, act_rng=2.0.
    N_STATE, M_ACT, N_HIDDEN = 16, 4, 32
    ACT_RNG = 2.0

    key = jax.random.PRNGKey(0)
    k_param, k_s1, k_s2 = jax.random.split(key, 3)
    params = init_policy_params(k_param, N_STATE, M_ACT, N_HIDDEN, w=0.1)

    # --- small batch, exact f32 path: tight tolerance ------------------------
    B_small = 8
    s_small = jax.random.normal(k_s1, (B_small, N_STATE), dtype=jnp.float32)
    out_f32 = jax.block_until_ready(
        policy_forward(s_small, params, ACT_RNG, compute_dtype=jnp.float32))
    ref_small = policy_ref(s_small, params, ACT_RNG)
    assert out_f32.shape == (B_small, M_ACT)
    assert jnp.allclose(out_f32, ref_small, atol=1e-5, rtol=1e-5)

    # --- default bf16 fast path on the same small batch ----------------------
    out_bf16 = jax.block_until_ready(policy_forward(s_small, params, ACT_RNG))
    assert jnp.allclose(out_bf16, ref_small, atol=3e-2, rtol=3e-2)

    # --- runtime act_rng via SMEM scalar (same kernel, different scale) ------
    out_rng = jax.block_until_ready(
        policy_forward(s_small, params, 0.5, compute_dtype=jnp.float32))
    ref_rng = policy_ref(s_small, params, 0.5)
    assert jnp.allclose(out_rng, ref_rng, atol=1e-5, rtol=1e-5)

    # --- non-divisible larger batch: exercises the masked partial block ------
    B_big = 2050   # no padding: cdiv grid, last block partial (masked stores)
    s_big = jax.random.normal(k_s2, (B_big, N_STATE), dtype=jnp.float32)
    out_big = jax.block_until_ready(policy_forward(s_big, params, ACT_RNG))
    ref_big = policy_ref(s_big, params, ACT_RNG)
    assert out_big.shape == (B_big, M_ACT)
    assert jnp.allclose(out_big, ref_big, atol=3e-2, rtol=3e-2)

    print("KERNEL_OK")
</pallas_src>

<mosaic_0001>
module attributes {stable_mosaic.version = 11 : i64} {
  func.func @policy_kernel(%arg0: i32, %arg1: memref<8x16xf32, #tpu.memory_space<vmem>>, %arg2: memref<16x32xf32, #tpu.memory_space<vmem>>, %arg3: memref<1x32xf32, #tpu.memory_space<vmem>>, %arg4: memref<32x32xf32, #tpu.memory_space<vmem>>, %arg5: memref<1x32xf32, #tpu.memory_space<vmem>>, %arg6: memref<32x4xf32, #tpu.memory_space<vmem>>, %arg7: memref<1x4xf32, #tpu.memory_space<vmem>>, %arg8: memref<1x1xf32, #tpu.memory_space<smem>>, %arg9: memref<8x4xf32, #tpu.memory_space<vmem>>) attributes {dimension_semantics = [#tpu.dimension_semantics<parallel>], iteration_bounds = array<i64: 1>, scalar_prefetch = 0 : i64, scratch_operands = 0 : i64, tpu.core_type = #tpu.core_type<tc>, window_params = [{transform_indices = @transform_0, window_bounds = array<i64: 8, 16>}, {pipeline_mode = #tpu.pipeline_mode<synchronous>, transform_indices = @transform_1, window_bounds = array<i64: 16, 32>}, {pipeline_mode = #tpu.pipeline_mode<synchronous>, transform_indices = @transform_2, window_bounds = array<i64: 1, 32>}, {pipeline_mode = #tpu.pipeline_mode<synchronous>, transform_indices = @transform_3, window_bounds = array<i64: 32, 32>}, {pipeline_mode = #tpu.pipeline_mode<synchronous>, transform_indices = @transform_4, window_bounds = array<i64: 1, 32>}, {pipeline_mode = #tpu.pipeline_mode<synchronous>, transform_indices = @transform_5, window_bounds = array<i64: 32, 4>}, {pipeline_mode = #tpu.pipeline_mode<synchronous>, transform_indices = @transform_6, window_bounds = array<i64: 1, 4>}, {transform_indices = @transform_7, window_bounds = array<i64: 1, 1>}, {transform_indices = @transform_8, window_bounds = array<i64: 8, 4>}]} {
    %c0 = arith.constant 0 : index
    %c0_0 = arith.constant 0 : index
    %0 = vector.load %arg1[%c0, %c0_0] : memref<8x16xf32, #tpu.memory_space<vmem>>, vector<8x16xf32>
    %c0_1 = arith.constant 0 : index
    %c0_2 = arith.constant 0 : index
    %1 = vector.load %arg2[%c0_1, %c0_2] : memref<16x32xf32, #tpu.memory_space<vmem>>, vector<16x32xf32>
    %cst = arith.constant dense<0.000000e+00> : vector<8x32xf32>
    %2 = tpu.matmul %0, %1, %cst {dimension_numbers = #tpu.dot_dimension_numbers<[1], [0], [0], [1], [0, 0, 1, 1], [], []>} : vector<8x16xf32>, vector<16x32xf32>, vector<8x32xf32> -> vector<8x32xf32>
    %c0_3 = arith.constant 0 : index
    %c0_4 = arith.constant 0 : index
    %3 = vector.load %arg3[%c0_3, %c0_4] : memref<1x32xf32, #tpu.memory_space<vmem>>, vector<1x32xf32>
    %4 = vector.broadcast %3 : vector<1x32xf32> to vector<8x32xf32>
    %5 = arith.addf %2, %4 : vector<8x32xf32>
    %cst_5 = arith.constant 0.000000e+00 : f32
    %6 = vector.broadcast %cst_5 : f32 to vector<8x32xf32>
    %7 = arith.maximumf %5, %6 : vector<8x32xf32>
    %c0_6 = arith.constant 0 : index
    %c0_7 = arith.constant 0 : index
    %8 = vector.load %arg4[%c0_6, %c0_7] : memref<32x32xf32, #tpu.memory_space<vmem>>, vector<32x32xf32>
    %cst_8 = arith.constant dense<0.000000e+00> : vector<8x32xf32>
    %9 = tpu.matmul %7, %8, %cst_8 {dimension_numbers = #tpu.dot_dimension_numbers<[1], [0], [0], [1], [0, 0, 1, 1], [], []>} : vector<8x32xf32>, vector<32x32xf32>, vector<8x32xf32> -> vector<8x32xf32>
    %c0_9 = arith.constant 0 : index
    %c0_10 = arith.constant 0 : index
    %10 = vector.load %arg5[%c0_9, %c0_10] : memref<1x32xf32, #tpu.memory_space<vmem>>, vector<1x32xf32>
    %11 = vector.broadcast %10 : vector<1x32xf32> to vector<8x32xf32>
    %12 = arith.addf %9, %11 : vector<8x32xf32>
    %cst_11 = arith.constant 0.000000e+00 : f32
    %13 = vector.broadcast %cst_11 : f32 to vector<8x32xf32>
    %14 = arith.maximumf %12, %13 : vector<8x32xf32>
    %c0_12 = arith.constant 0 : index
    %c0_13 = arith.constant 0 : index
    %15 = vector.load %arg6[%c0_12, %c0_13] : memref<32x4xf32, #tpu.memory_space<vmem>>, vector<32x4xf32>
    %cst_14 = arith.constant dense<0.000000e+00> : vector<8x4xf32>
    %16 = tpu.matmul %14, %15, %cst_14 {dimension_numbers = #tpu.dot_dimension_numbers<[1], [0], [0], [1], [0, 0, 1, 1], [], []>} : vector<8x32xf32>, vector<32x4xf32>, vector<8x4xf32> -> vector<8x4xf32>
    %c0_15 = arith.constant 0 : index
    %c0_16 = arith.constant 0 : index
    %17 = vector.load %arg7[%c0_15, %c0_16] : memref<1x4xf32, #tpu.memory_space<vmem>>, vector<1x4xf32>
    %18 = vector.broadcast %17 : vector<1x4xf32> to vector<8x4xf32>
    %19 = arith.addf %16, %18 : vector<8x4xf32>
    %20 = math.tanh %19 : vector<8x4xf32>
    %c0_17 = arith.constant 0 : index
    %c0_18 = arith.constant 0 : index
    %21 = memref.load %arg8[%c0_17, %c0_18] : memref<1x1xf32, #tpu.memory_space<smem>>
    %22 = vector.broadcast %21 : f32 to vector<8x4xf32>
    %23 = arith.mulf %20, %22 : vector<8x4xf32>
    %c0_19 = arith.constant 0 : index
    %c0_20 = arith.constant 0 : index
    %24 = vector.load %arg9[%c0_19, %c0_20] : memref<8x4xf32, #tpu.memory_space<vmem>>, vector<8x4xf32>
    tpu.vector_store %arg9[%c0_19, %c0_20], %23 {strides = array<i32>} : memref<8x4xf32, #tpu.memory_space<vmem>>, vector<8x4xf32>,
    return
  }
  func.func @transform_0(%arg0: i32) -> (i32, i32) {
    %c0_i32 = arith.constant 0 : i32
    %c0_i32_0 = arith.constant 0 : i32
    return %arg0, %c0_i32 : i32, i32
  }
  func.func @transform_1(%arg0: i32) -> (i32, i32) {
    %c0_i32 = arith.constant 0 : i32
    %c0_i32_0 = arith.constant 0 : i32
    %c0_i32_1 = arith.constant 0 : i32
    return %c0_i32, %c0_i32_0 : i32, i32
  }
  func.func @transform_2(%arg0: i32) -> (i32, i32) {
    %c0_i32 = arith.constant 0 : i32
    %c0_i32_0 = arith.constant 0 : i32
    %c0_i32_1 = arith.constant 0 : i32
    return %c0_i32, %c0_i32_0 : i32, i32
  }
  func.func @transform_3(%arg0: i32) -> (i32, i32) {
    %c0_i32 = arith.constant 0 : i32
    %c0_i32_0 = arith.constant 0 : i32
    %c0_i32_1 = arith.constant 0 : i32
    return %c0_i32, %c0_i32_0 : i32, i32
  }
  func.func @transform_4(%arg0: i32) -> (i32, i32) {
    %c0_i32 = arith.constant 0 : i32
    %c0_i32_0 = arith.constant 0 : i32
    %c0_i32_1 = arith.constant 0 : i32
    return %c0_i32, %c0_i32_0 : i32, i32
  }
  func.func @transform_5(%arg0: i32) -> (i32, i32) {
    %c0_i32 = arith.constant 0 : i32
    %c0_i32_0 = arith.constant 0 : i32
    %c0_i32_1 = arith.constant 0 : i32
    return %c0_i32, %c0_i32_0 : i32, i32
  }
  func.func @transform_6(%arg0: i32) -> (i32, i32) {
    %c0_i32 = arith.constant 0 : i32
    %c0_i32_0 = arith.constant 0 : i32
    %c0_i32_1 = arith.constant 0 : i32
    return %c0_i32, %c0_i32_0 : i32, i32
  }
  func.func @transform_7(%arg0: i32) -> (i32, i32) {
    %c0_i32 = arith.constant 0 : i32
    %c0_i32_0 = arith.constant 0 : i32
    %c0_i32_1 = arith.constant 0 : i32
    return %c0_i32, %c0_i32_0 : i32, i32
  }
  func.func @transform_8(%arg0: i32) -> (i32, i32) {
    %c0_i32 = arith.constant 0 : i32
    %c0_i32_0 = arith.constant 0 : i32
    return %arg0, %c0_i32 : i32, i32
  }
}

</mosaic_0001>

<llo_original>
// kernel: tpu_custom_call.1
$region0: #{tpu_custom_call.1}
  #allocation0 [shape = 'u32[]', space=smem, size = 0x4, offset = 0x4, fixed_abs, tag = 'smem constant byte address 0x4 - core index']
  #allocation1 [shape = 'u32[144,128]{1,0:T(1,128)}', space=vmem, size = 0x12000, scoped, tag = 'internal scratch']
  #allocation2 [shape = 'f32[1,1]{1,0:T(1,128)S(6)}', space=smem, size = 0x200, scoped, tag = 'scoped memory for tpu_custom_call.1']
  %s0 = inlined_call_operand.hbm [shape: f32[8,16], index: 0, kind: input, shape index: {}]
  %s1 = inlined_call_operand.vmem [shape: f32[16,32], index: 1, kind: input, shape index: {}]
  %s2 = inlined_call_operand.vmem [shape: f32[1,32], index: 2, kind: input, shape index: {}]
  %s3 = inlined_call_operand.vmem [shape: f32[32,32], index: 3, kind: input, shape index: {}]
  %s4 = inlined_call_operand.vmem [shape: f32[1,32], index: 4, kind: input, shape index: {}]
  %s5 = inlined_call_operand.vmem [shape: f32[32,4], index: 5, kind: input, shape index: {}]
  %s6 = inlined_call_operand.vmem [shape: f32[1,4], index: 6, kind: input, shape index: {}]
  %s7 = inlined_call_operand.<no memory space> [shape: f32[1,1], index: 7, kind: input, shape index: {}]
  %s8 = inlined_call_operand.vmem [shape: f32[8,4], index: 8, kind: output, shape index: {}]
  %s9 = sld [smem:[#allocation0]]
  $region46: #{tpu_custom_call.1} parent=0
    _
  %s11 = ssub.s32 1, %s9
  %s12 = scalar_select 0, %s11, %s9
  %13 = sst [smem:[#allocation2]] %s7
  $region1: #{tpu_custom_call.1} parent=0
    #allocation3 [shape = 'u8[4096]{0}', space=vmem, size = 0x1000, scoped, tag = 'input window, operand 0, single buffered']
    #allocation4 [shape = 's32[1]{0}', space=sflag, size = 0x4, scoped, tag = 'scoped memory for tpu_custom_call.1']
    %14 = vsyncpa [#allocation4], 0
    // Predicated region
    $region2: #{tpu_custom_call.1} parent=1 // pred_check
      _
    $region3: #{tpu_custom_call.1} parent=1 // pred_check_branch
      %16 = sbr.rel (0) target = $region5
    $region4: #{tpu_custom_call.1} parent=1 // pred_region
      %s18 = ssub.s32 128, 128
      %19 = vsyncadd [#allocation4], %s18
      %s21 = sshll.u32 [#allocation3], 4
      %s22 = int_to_ptr.vmem [resolvable:$true] %s21
      %24 = dma.hbm_to_vmem [thread:$0]  %s0, 128, %s22, [#allocation4]
    $region5: #{tpu_custom_call.1} parent=1 // pred_fallthru
      _
    // Predicated region
    $region6: #{tpu_custom_call.1} parent=1 // pred_check
      _
    $region7: #{tpu_custom_call.1} parent=1 // pred_check_branch
      %26 = sbr.rel (0) target = $region9
    $region8: #{tpu_custom_call.1} parent=1 // pred_region
      _
    $region9: #{tpu_custom_call.1} parent=1 // pred_fallthru
      _
    // Predicated region
    $region10: #{tpu_custom_call.1} parent=1 // pred_check
      _
    $region11: #{tpu_custom_call.1} parent=1 // pred_check_branch
      %28 = sbr.rel (0) target = $region13
    $region12: #{tpu_custom_call.1} parent=1 // pred_region
      _
    $region13: #{tpu_custom_call.1} parent=1 // pred_fallthru
      _
    // Predicated region
    $region14: #{tpu_custom_call.1} parent=1 // pred_check
      _
    $region15: #{tpu_custom_call.1} parent=1 // pred_check_branch
      %30 = sbr.rel (0) target = $region17
    $region16: #{tpu_custom_call.1} parent=1 // pred_region
      _
    $region17: #{tpu_custom_call.1} parent=1 // pred_fallthru
      _
    // Predicated region
    $region18: #{tpu_custom_call.1} parent=1 // pred_check
      _
    $region19: #{tpu_custom_call.1} parent=1 // pred_check_branch
      %32 = sbr.rel (0) target = $region21
    $region20: #{tpu_custom_call.1} parent=1 // pred_region
      _
    $region21: #{tpu_custom_call.1} parent=1 // pred_fallthru
      _
    // Predicated region
    $region22: #{tpu_custom_call.1} parent=1 // pred_check
      _
    $region23: #{tpu_custom_call.1} parent=1 // pred_check_branch
      %34 = sbr.rel (0) target = $region25
    $region24: #{tpu_custom_call.1} parent=1 // pred_region
      _
    $region25: #{tpu_custom_call.1} parent=1 // pred_fallthru
      _
    // Predicated region
    $region26: #{tpu_custom_call.1} parent=1 // pred_check
      _
    $region27: #{tpu_custom_call.1} parent=1 // pred_check_branch
      %36 = sbr.rel (0) target = $region29
    $region28: #{tpu_custom_call.1} parent=1 // pred_region
      _
    $region29: #{tpu_custom_call.1} parent=1 // pred_fallthru
      _
    // Predicated region
    $region30: #{tpu_custom_call.1} parent=1 // pred_check
      _
    $region31: #{tpu_custom_call.1} parent=1 // pred_check_branch
      %38 = sbr.rel (0) target = $region33
    $region32: #{tpu_custom_call.1} parent=1 // pred_region
      _
    $region33: #{tpu_custom_call.1} parent=1 // pred_fallthru
      _
    // Predicated region
    $region34: #{tpu_custom_call.1} parent=1 // pred_check
      _
    $region35: #{tpu_custom_call.1} parent=1 // pred_check_branch
      %40 = sbr.rel (0) target = $region37
    $region36: #{tpu_custom_call.1} parent=1 // pred_region
      %41 = dma.done [#allocation4], 128
    $region37: #{tpu_custom_call.1} parent=1 // pred_fallthru
      _
    %v42 = vld [vmem:[#allocation3] sm:$0xff]
    %v43 = vld [vmem:[%s1] sm:$0xff]
    %v44 = vld [vmem:[%s1 + $0x8] sm:$0xff]
    %v45 = vld [vmem:[%s2] sm:$0x1]
    %v47 = vlaneseq
    %v48 = vshrl.u32 %v47, 7
    %v49 = vsub.s32 0, %v48
    %v50 = vrot.slane %v45, %v49
    %vm52 = vcmask 130048
    %v54 = vsel %vm52, %v42, 0
    %56 = vmatprep.subr.mxu0 0.0
    %57 = vmatpush1.msra.mxu0 %v43
    %58 = vmatprep.subr.mxu0 0.0
    %59 = vmatpush1.msra.mxu0 %v44
    %60 = vmatprep.subr.mxu0 0.0
    %61 = vmatpush1.msra.mxu0 0.0
    %62 = vmatprep.subr.mxu0 0.0
    %63 = vmatpush1.msra.mxu0 0.0
    %64 = vmatprep.subr.mxu0 0.0
    %65 = vmatpush1.msra.mxu0 0.0
    %66 = vmatprep.subr.mxu0 0.0
    %67 = vmatpush1.msra.mxu0 0.0
    %68 = vmatprep.subr.mxu0 0.0
    %69 = vmatpush1.msra.mxu0 0.0
    %70 = vmatprep.subr.mxu0 0.0
    %71 = vmatpush1.msra.mxu0 0.0
    %72 = vmatprep.subr.mxu0 0.0
    %73 = vmatpush1.msra.mxu0 0.0
    %74 = vmatprep.subr.mxu0 0.0
    %75 = vmatpush1.msra.mxu0 0.0
    %76 = vmatprep.subr.mxu0 0.0
    %77 = vmatpush1.msra.mxu0 0.0
    %78 = vmatprep.subr.mxu0 0.0
    %79 = vmatpush1.msra.mxu0 0.0
    %80 = vmatprep.subr.mxu0 0.0
    %81 = vmatpush1.msra.mxu0 0.0
    %82 = vmatprep.subr.mxu0 0.0
    %83 = vmatpush1.msra.mxu0 0.0
    %84 = vmatprep.subr.mxu0 0.0
    %85 = vmatpush1.msra.mxu0 0.0
    %86 = vmatprep.subr.mxu0 0.0
    %87 = vmatpush1.msra.mxu0 0.0
    %88 = vmatprep.subr.mxu0 0.0
    %89 = vmatpush1.msra.mxu0 0.0
    %90 = vmatprep.subr.mxu0 0.0
    %91 = vmatpush1.msra.mxu0 0.0
    %92 = vmatprep.subr.mxu0 0.0
    %93 = vmatpush1.msra.mxu0 0.0
    %94 = vmatprep.subr.mxu0 0.0
    %95 = vmatpush1.msra.mxu0 0.0
    %96 = vmatprep.subr.mxu0 0.0
    %97 = vmatpush1.msra.mxu0 0.0
    %98 = vmatprep.subr.mxu0 0.0
    %99 = vmatpush1.msra.mxu0 0.0
    %100 = vmatprep.subr.mxu0 0.0
    %101 = vmatpush1.msra.mxu0 0.0
    %102 = vmatprep.subr.mxu0 0.0
    %103 = vmatpush1.msra.mxu0 0.0
    %104 = vmatprep.subr.mxu0 0.0
    %105 = vmatpush1.msra.mxu0 0.0
    %106 = vmatprep.subr.mxu0 0.0
    %107 = vmatpush1.msra.mxu0 0.0
    %108 = vmatprep.subr.mxu0 0.0
    %109 = vmatpush1.msra.mxu0 0.0
    %110 = vmatprep.subr.mxu0 0.0
    %111 = vmatpush1.msra.mxu0 0.0
    %112 = vmatprep.subr.mxu0 0.0
    %113 = vmatpush1.msra.mxu0 0.0
    %114 = vmatprep.subr.mxu0 0.0
    %115 = vmatpush1.msra.mxu0 0.0
    %116 = vmatprep.subr.mxu0 0.0
    %117 = vmatpush1.msra.mxu0 0.0
    %118 = vmatprep.subr.mxu0 0.0
    %119 = vmatpush1.msra.mxu0 0.0
    %120 = vmatprep.mubr.f32.mxu0 0.0
    %121 = vmatmul.mubr.f32.gmra.mrb[0].mxu0 %v54
    %v122 = vpop.f32.mrb[0].mxu0
    %v123 = vadd.f32 %v50, %v122
    %v124 = vpop.f32.mrb[0].mxu0
    %125 = vdwg.mxu0
    %v126 = vmax.f32 %v123, 0.0
    %v127 = vld [vmem:[%s3] sm:$0xff]
    %v128 = vld [vmem:[%s3 + $0x8] sm:$0xff]
    %v129 = vld [vmem:[%s3 + $0x10] sm:$0xff]
    %v130 = vld [vmem:[%s3 + $0x18] sm:$0xff]
    %v131 = vld [vmem:[%s4] sm:$0x1]
    %v133 = vlaneseq
    %v134 = vshrl.u32 %v133, 7
    %v135 = vsub.s32 0, %v134
    %v136 = vrot.slane %v131, %v135
    %vm138 = vcmask 261120
    %v140 = vsel %vm138, %v126, 0
    %142 = vmatprep.subr.mxu0 0.0
    %143 = vmatpush1.msra.mxu0 %v127
    %144 = vmatprep.subr.mxu0 0.0
    %145 = vmatpush1.msra.mxu0 %v128
    %146 = vmatprep.subr.mxu0 0.0
    %147 = vmatpush1.msra.mxu0 %v129
    %148 = vmatprep.subr.mxu0 0.0
    %149 = vmatpush1.msra.mxu0 %v130
    %150 = vmatprep.subr.mxu0 0.0
    %151 = vmatpush1.msra.mxu0 0.0
    %152 = vmatprep.subr.mxu0 0.0
    %153 = vmatpush1.msra.mxu0 0.0
    %154 = vmatprep.subr.mxu0 0.0
    %155 = vmatpush1.msra.mxu0 0.0
    %156 = vmatprep.subr.mxu0 0.0
    %157 = vmatpush1.msra.mxu0 0.0
    %158 = vmatprep.subr.mxu0 0.0
    %159 = vmatpush1.msra.mxu0 0.0
    %160 = vmatprep.subr.mxu0 0.0
    %161 = vmatpush1.msra.mxu0 0.0
    %162 = vmatprep.subr.mxu0 0.0
    %163 = vmatpush1.msra.mxu0 0.0
    %164 = vmatprep.subr.mxu0 0.0
    %165 = vmatpush1.msra.mxu0 0.0
    %166 = vmatprep.subr.mxu0 0.0
    %167 = vmatpush1.msra.mxu0 0.0
    %168 = vmatprep.subr.mxu0 0.0
    %169 = vmatpush1.msra.mxu0 0.0
    %170 = vmatprep.subr.mxu0 0.0
    %171 = vmatpush1.msra.mxu0 0.0
    %172 = vmatprep.subr.mxu0 0.0
    %173 = vmatpush1.msra.mxu0 0.0
    %174 = vmatprep.subr.mxu0 0.0
    %175 = vmatpush1.msra.mxu0 0.0
    %176 = vmatprep.subr.mxu0 0.0
    %177 = vmatpush1.msra.mxu0 0.0
    %178 = vmatprep.subr.mxu0 0.0
    %179 = vmatpush1.msra.mxu0 0.0
    %180 = vmatprep.subr.mxu0 0.0
    %181 = vmatpush1.msra.mxu0 0.0
    %182 = vmatprep.subr.mxu0 0.0
    %183 = vmatpush1.msra.mxu0 0.0
    %184 = vmatprep.subr.mxu0 0.0
    %185 = vmatpush1.msra.mxu0 0.0
    %186 = vmatprep.subr.mxu0 0.0
    %187 = vmatpush1.msra.mxu0 0.0
    %188 = vmatprep.subr.mxu0 0.0
    %189 = vmatpush1.msra.mxu0 0.0
    %190 = vmatprep.subr.mxu0 0.0
    %191 = vmatpush1.msra.mxu0 0.0
    %192 = vmatprep.subr.mxu0 0.0
    %193 = vmatpush1.msra.mxu0 0.0
    %194 = vmatprep.subr.mxu0 0.0
    %195 = vmatpush1.msra.mxu0 0.0
    %196 = vmatprep.subr.mxu0 0.0
    %197 = vmatpush1.msra.mxu0 0.0
    %198 = vmatprep.subr.mxu0 0.0
    %199 = vmatpush1.msra.mxu0 0.0
    %200 = vmatprep.subr.mxu0 0.0
    %201 = vmatpush1.msra.mxu0 0.0
    %202 = vmatprep.subr.mxu0 0.0
    %203 = vmatpush1.msra.mxu0 0.0
    %204 = vmatprep.subr.mxu0 0.0
    %205 = vmatpush1.msra.mxu0 0.0
    %206 = vmatprep.mubr.f32.mxu0 0.0
    %207 = vmatmul.mubr.f32.gmra.mrb[0].mxu0 %v140
    %v208 = vpop.f32.mrb[0].mxu0
    %v209 = vadd.f32 %v136, %v208
    %v210 = vpop.f32.mrb[0].mxu0
    %211 = vdwg.mxu0
    %v212 = vmax.f32 %v209, 0.0
    %v213 = vld [vmem:[%s5] sm:$0xff]
    %v214 = vld [vmem:[%s5 + $0x8] sm:$0xff]
    %v215 = vld [vmem:[%s5 + $0x10] sm:$0xff]
    %v216 = vld [vmem:[%s5 + $0x18] sm:$0xff]
    %v217 = vld [vmem:[%s6] sm:$0x1]
    %v219 = vlaneseq
    %v220 = vshrl.u32 %v219, 7
    %v221 = vsub.s32 0, %v220
    %v222 = vrot.slane %v217, %v221
    %v225 = vsel %vm138, %v212, 0
    %227 = vmatprep.subr.mxu0 0.0
    %228 = vmatpush1.msra.mxu0 %v213
    %229 = vmatprep.subr.mxu0 0.0
    %230 = vmatpush1.msra.mxu0 %v214
    %231 = vmatprep.subr.mxu0 0.0
    %232 = vmatpush1.msra.mxu0 %v215
    %233 = vmatprep.subr.mxu0 0.0
    %234 = vmatpush1.msra.mxu0 %v216
    %235 = vmatprep.subr.mxu0 0.0
    %236 = vmatpush1.msra.mxu0 0.0
    %237 = vmatprep.subr.mxu0 0.0
    %238 = vmatpush1.msra.mxu0 0.0
    %239 = vmatprep.subr.mxu0 0.0
    %240 = vmatpush1.msra.mxu0 0.0
    %241 = vmatprep.subr.mxu0 0.0
    %242 = vmatpush1.msra.mxu0 0.0
    %243 = vmatprep.subr.mxu0 0.0
    %244 = vmatpush1.msra.mxu0 0.0
    %245 = vmatprep.subr.mxu0 0.0
    %246 = vmatpush1.msra.mxu0 0.0
    %247 = vmatprep.subr.mxu0 0.0
    %248 = vmatpush1.msra.mxu0 0.0
    %249 = vmatprep.subr.mxu0 0.0
    %250 = vmatpush1.msra.mxu0 0.0
    %251 = vmatprep.subr.mxu0 0.0
    %252 = vmatpush1.msra.mxu0 0.0
    %253 = vmatprep.subr.mxu0 0.0
    %254 = vmatpush1.msra.mxu0 0.0
    %255 = vmatprep.subr.mxu0 0.0
    %256 = vmatpush1.msra.mxu0 0.0
    %257 = vmatprep.subr.mxu0 0.0
    %258 = vmatpush1.msra.mxu0 0.0
    %259 = vmatprep.subr.mxu0 0.0
    %260 = vmatpush1.msra.mxu0 0.0
    %261 = vmatprep.subr.mxu0 0.0
    %262 = vmatpush1.msra.mxu0 0.0
    %263 = vmatprep.subr.mxu0 0.0
    %264 = vmatpush1.msra.mxu0 0.0
    %265 = vmatprep.subr.mxu0 0.0
    %266 = vmatpush1.msra.mxu0 0.0
    %267 = vmatprep.subr.mxu0 0.0
    %268 = vmatpush1.msra.mxu0 0.0
    %269 = vmatprep.subr.mxu0 0.0
    %270 = vmatpush1.msra.mxu0 0.0
    %271 = vmatprep.subr.mxu0 0.0
    %272 = vmatpush1.msra.mxu0 0.0
    %273 = vmatprep.subr.mxu0 0.0
    %274 = vmatpush1.msra.mxu0 0.0
    %275 = vmatprep.subr.mxu0 0.0
    %276 = vmatpush1.msra.mxu0 0.0
    %277 = vmatprep.subr.mxu0 0.0
    %278 = vmatpush1.msra.mxu0 0.0
    %279 = vmatprep.subr.mxu0 0.0
    %280 = vmatpush1.msra.mxu0 0.0
    %281 = vmatprep.subr.mxu0 0.0
    %282 = vmatpush1.msra.mxu0 0.0
    %283 = vmatprep.subr.mxu0 0.0
    %284 = vmatpush1.msra.mxu0 0.0
    %285 = vmatprep.subr.mxu0 0.0
    %286 = vmatpush1.msra.mxu0 0.0
    %287 = vmatprep.subr.mxu0 0.0
    %288 = vmatpush1.msra.mxu0 0.0
    %289 = vmatprep.subr.mxu0 0.0
    %290 = vmatpush1.msra.mxu0 0.0
    %291 = vmatprep.mubr.f32.mxu0 0.0
    %292 = vmatmul.mubr.f32.gmra.mrb[0].mxu0 %v225
    %v293 = vpop.f32.mrb[0].mxu0
    %v294 = vadd.f32 %v222, %v293
    %v295 = vpop.f32.mrb[0].mxu0
    %296 = vdwg.mxu0
    %v297 = vtanh.pop %v294
    %s298 = sld [smem:[#allocation2]]
    %v299 = vstv %s298
    %v300 = vmul.f32 %v297, %v299
    %vm301 = vcmask 31744
    %302 = vst.msk [vmem:[%s8] sm:$0xff] %vm301, %v300
    // Predicated region
    $region38: #{tpu_custom_call.1} parent=1 // pred_check
      _
    $region39: #{tpu_custom_call.1} parent=1 // pred_check_branch
      %304 = sbr.rel (0) target = $region41
    $region40: #{tpu_custom_call.1} parent=1 // pred_region
      _
    $region41: #{tpu_custom_call.1} parent=1 // pred_fallthru
      _
    // Predicated region
    $region42: #{tpu_custom_call.1} parent=1 // pred_check
      _
    $region43: #{tpu_custom_call.1} parent=1 // pred_check_branch
      %306 = sbr.rel (0) target = $region45
    $region44: #{tpu_custom_call.1} parent=1 // pred_region
      _
    $region45: #{tpu_custom_call.1} parent=1 // pred_fallthru
      _
    %307 = vsyncpa [#allocation4], 1

</llo_original>
